<compile_context>
chip_gen: v7x
topology: tpu7x:2x2x1
jax: 0.10.0
libtpu: 0.0.40
codegen_flags: <defaults>
</compile_context>

<pallas_src>
import jax
import jax.numpy as jnp
from jax.experimental import pallas as pl
from jax.experimental.pallas import tpu as pltpu


def _round_up(x, m):
    return ((x + m - 1) // m) * m


def dummy_model_kernel(ids_ref, agg_ref, m_ref, out_ref):
    """logits = (agg @ onehot(ids)) @ M  -- single bf16 MXU path.

    ids_ref: (Bp*S, 1) int32 flattened token ids
    agg_ref: (Bp, Bp*S) bf16 constant summing the S tokens of each batch item
    m_ref:   (Vp, Lp) bf16 folded (emb/S) @ w1 @ w2 with bias/S folded in
    out_ref: (Bp, Lp) f32 logits (padded)
    """
    flat_ids = ids_ref[...]                                       # (Bp*S, 1)
    bs = flat_ids.shape[0]
    vp = m_ref.shape[0]

    # 2-D one-hot: vocab on lanes, (batch*seq) on sublanes.  0/1 exact in bf16.
    vocab_iota = jax.lax.broadcasted_iota(jnp.int32, (bs, vp), 1)
    onehot = (flat_ids == vocab_iota).astype(jnp.bfloat16)        # (Bp*S, Vp)

    # Per-(batch, vocab) token counts on the MXU.  counts <= S, exact small
    # integers, so the bf16 recast for the next matmul loses nothing.
    counts = jnp.dot(agg_ref[...], onehot,
                     preferred_element_type=jnp.float32)          # (Bp, Vp)

    # Single folded matmul: embedding-mean, linear, classifier and both biases
    # all live inside M (built once in the wrapper).
    out_ref[...] = jnp.dot(counts.astype(jnp.bfloat16), m_ref[...],
                           preferred_element_type=jnp.float32)    # (Bp, Lp)


def make_dummy_model(emb_table, w1, b1, w2, b2, *, seq_len, batch):
    """One-time init: fold all weights, build constants, return jitted forward.

    emb_table: (V, E) f32   -- nn.Embedding weight
    w1: (E, H) f32, b1: (H,)   -- nn.Linear(E, H), weight pre-transposed
    w2: (H, L) f32, b2: (L,)   -- nn.Linear(H, L), weight pre-transposed
    """
    V, E = emb_table.shape
    L = w2.shape[1]
    S = seq_len

    bp = max(_round_up(batch, 8), 8)   # sublane-aligned batch
    vp = _round_up(V, 128)             # lane-dense vocab
    lp = _round_up(L, 128)             # lane-dense label dim

    # ---- one-time trace-time folds (never re-run per forward) ----
    m = (emb_table.astype(jnp.float32) * (1.0 / S)) @ w1 @ w2     # (V, L)
    b12 = b1 @ w2 + b2                                            # (L,)
    # Bias fold: every real counts row sums to exactly S (all ids in [0, V)),
    # so adding b12/S to each real vocab row adds exactly b12 to the logits.
    m = m + b12[None, :] * (1.0 / S)
    m_p = jnp.zeros((vp, lp), jnp.float32).at[:V, :L].set(m).astype(jnp.bfloat16)

    # Aggregation matrix: row b has ones at columns [b*S, (b+1)*S).
    agg = jnp.repeat(jnp.eye(bp, dtype=jnp.bfloat16), S, axis=1)  # (Bp, Bp*S)

    vmem = pl.BlockSpec(memory_space=pltpu.MemorySpace.VMEM)
    call = pl.pallas_call(
        dummy_model_kernel,
        out_shape=jax.ShapeDtypeStruct((bp, lp), jnp.float32),
        in_specs=[vmem, vmem, vmem],
        out_specs=vmem,
    )

    @jax.jit
    def forward(input_ids):
        # Per-call work is only ids padding/reshape + the kernel + a slice.
        ids_p = jnp.zeros((bp, S), jnp.int32).at[:batch].set(
            input_ids.astype(jnp.int32))
        ids_flat = ids_p.reshape(bp * S, 1)
        out_p = call(ids_flat, agg, m_p)
        return out_p[:batch, :L]

    return forward, m_p


if __name__ == "__main__":
    # Small shapes consistent with the module's forward.
    vocab_size = 32
    embedding_dim = 16
    hidden_dim = 32
    num_labels = 4
    batch = 2
    seq = 8

    # Deterministic parameter init matching the PyTorch module:
    #   embedding weight = 0.5, linear weight = 0.1, classifier weight = 0.2,
    #   both biases = 0.  Linear weights stored transposed: (in, out).
    emb_table = jnp.full((vocab_size, embedding_dim), 0.5, dtype=jnp.float32)
    w1 = jnp.full((embedding_dim, hidden_dim), 0.1, dtype=jnp.float32)
    b1 = jnp.zeros((hidden_dim,), dtype=jnp.float32)
    w2 = jnp.full((hidden_dim, num_labels), 0.2, dtype=jnp.float32)
    b2 = jnp.zeros((num_labels,), dtype=jnp.float32)

    key = jax.random.PRNGKey(0)
    input_ids = jax.random.randint(key, (batch, seq), 0, vocab_size,
                                   dtype=jnp.int32)

    forward, m_folded = make_dummy_model(emb_table, w1, b1, w2, b2,
                                         seq_len=seq, batch=batch)
    logits = forward(input_ids)
    logits = jax.block_until_ready(logits)

    # Pure-JAX f32 reference: exactly the PyTorch forward.
    embedded = jnp.take(emb_table, input_ids, axis=0)             # (B, S, E)
    x_ref = embedded.mean(axis=1) @ w1 + b1                       # (B, H)
    logits_ref = x_ref @ w2 + b2                                  # (B, L)

    assert logits.shape == (batch, num_labels)
    # The kernel's folded weight matrix runs in bf16 on the MXU (no TPU
    # generation has a native f32 matmul path), so compare against the f32
    # reference at bf16-level tolerance.
    assert jnp.allclose(logits, logits_ref, atol=1e-2, rtol=1e-2), (
        logits, logits_ref)

    # Tight check against the exact bf16-folded math the kernel implements.
    counts_ref = jax.nn.one_hot(input_ids, vocab_size,
                                dtype=jnp.float32).sum(axis=1)    # (B, V)
    logits_fold_ref = counts_ref @ m_folded[:vocab_size, :num_labels].astype(
        jnp.float32)
    assert jnp.allclose(logits, logits_fold_ref, atol=1e-5, rtol=1e-5), (
        logits, logits_fold_ref)

    print("KERNEL_OK")
</pallas_src>

<mosaic_0001>
module attributes {stable_mosaic.version = 11 : i64} {
  func.func @dummy_model_kernel(%arg0: memref<64x1xi32, #tpu.memory_space<vmem>>, %arg1: memref<8x64xbf16, #tpu.memory_space<vmem>>, %arg2: memref<128x128xbf16, #tpu.memory_space<vmem>>, %arg3: memref<8x128xf32, #tpu.memory_space<vmem>>) attributes {dimension_semantics = [], scalar_prefetch = 0 : i64, scratch_operands = 0 : i64, tpu.core_type = #tpu.core_type<tc>} {
    %c0 = arith.constant 0 : index
    %c0_0 = arith.constant 0 : index
    %0 = vector.load %arg0[%c0, %c0_0] : memref<64x1xi32, #tpu.memory_space<vmem>>, vector<64x1xi32>
    %1 = tpu.iota {dimensions = array<i32: 1>} : vector<64x128xi32>
    %2 = vector.broadcast %0 : vector<64x1xi32> to vector<64x128xi32>
    %3 = arith.cmpi eq, %2, %1 : vector<64x128xi32>
    %4 = arith.extui %3 : vector<64x128xi1> to vector<64x128xi32>
    %5 = arith.sitofp %4 : vector<64x128xi32> to vector<64x128xf32>
    %6 = arith.truncf %5 : vector<64x128xf32> to vector<64x128xbf16>
    %c0_1 = arith.constant 0 : index
    %c0_2 = arith.constant 0 : index
    %7 = vector.load %arg1[%c0_1, %c0_2] : memref<8x64xbf16, #tpu.memory_space<vmem>>, vector<8x64xbf16>
    %cst = arith.constant dense<0.000000e+00> : vector<8x128xf32>
    %8 = tpu.matmul %7, %6, %cst {dimension_numbers = #tpu.dot_dimension_numbers<[1], [0], [0], [1], [0, 0, 1, 1], [], []>} : vector<8x64xbf16>, vector<64x128xbf16>, vector<8x128xf32> -> vector<8x128xf32>
    %9 = arith.truncf %8 : vector<8x128xf32> to vector<8x128xbf16>
    %c0_3 = arith.constant 0 : index
    %c0_4 = arith.constant 0 : index
    %10 = vector.load %arg2[%c0_3, %c0_4] : memref<128x128xbf16, #tpu.memory_space<vmem>>, vector<128x128xbf16>
    %cst_5 = arith.constant dense<0.000000e+00> : vector<8x128xf32>
    %11 = tpu.matmul %9, %10, %cst_5 {dimension_numbers = #tpu.dot_dimension_numbers<[1], [0], [0], [1], [0, 0, 1, 1], [], []>} : vector<8x128xbf16>, vector<128x128xbf16>, vector<8x128xf32> -> vector<8x128xf32>
    %c0_6 = arith.constant 0 : index
    %c0_7 = arith.constant 0 : index
    %12 = vector.load %arg3[%c0_6, %c0_7] : memref<8x128xf32, #tpu.memory_space<vmem>>, vector<8x128xf32>
    tpu.vector_store %arg3[%c0_6, %c0_7], %11 {strides = array<i32>} : memref<8x128xf32, #tpu.memory_space<vmem>>, vector<8x128xf32>,
    return
  }
}

</mosaic_0001>

<llo_original>
// kernel: forward.1
$region0: #{forward.1}
  #allocation0 [shape = 'u32[]', space=smem, size = 0x4, offset = 0x4, fixed_abs, tag = 'smem constant byte address 0x4 - core index']
  #allocation1 [shape = 'u32[144,128]{1,0:T(1,128)}', space=vmem, size = 0x12000, scoped, tag = 'internal scratch']
  %s0 = inlined_call_operand.vmem [shape: s32[64,1], index: 0, kind: input, shape index: {}]
  %s1 = inlined_call_operand.vmem [shape: bf16[8,64], index: 1, kind: input, shape index: {}]
  %s2 = inlined_call_operand.vmem [shape: bf16[128,128], index: 2, kind: input, shape index: {}]
  %s3 = inlined_call_operand.vmem [shape: f32[8,128], index: 3, kind: output, shape index: {}]
  %s4 = sld [smem:[#allocation0]]
  $region22: #{forward.1} parent=0
    _
  %s6 = ssub.s32 1, %s4
  %s7 = scalar_select 0, %s6, %s4
  // Predicated region
  $region2: #{forward.1} parent=0 // pred_check
    _
  $region3: #{forward.1} parent=0 // pred_check_branch
    %9 = sbr.rel (0) target = $region5
  $region4: #{forward.1} parent=0 // pred_region
    _
  $region5: #{forward.1} parent=0 // pred_fallthru
    _
  // Predicated region
  $region6: #{forward.1} parent=0 // pred_check
    _
  $region7: #{forward.1} parent=0 // pred_check_branch
    %11 = sbr.rel (0) target = $region9
  $region8: #{forward.1} parent=0 // pred_region
    _
  $region9: #{forward.1} parent=0 // pred_fallthru
    _
  // Predicated region
  $region10: #{forward.1} parent=0 // pred_check
    _
  $region11: #{forward.1} parent=0 // pred_check_branch
    %13 = sbr.rel (0) target = $region13
  $region12: #{forward.1} parent=0 // pred_region
    _
  $region13: #{forward.1} parent=0 // pred_fallthru
    _
  %v15 = vld [vmem:[%s0] sm:$0xff]
  %v16 = vld [vmem:[%s0 + $0x8] sm:$0xff]
  %v17 = vld [vmem:[%s0 + $0x10] sm:$0xff]
  %v18 = vld [vmem:[%s0 + $0x18] sm:$0xff]
  %v19 = vld [vmem:[%s0 + $0x20] sm:$0xff]
  %v20 = vld [vmem:[%s0 + $0x28] sm:$0xff]
  %v21 = vld [vmem:[%s0 + $0x30] sm:$0xff]
  %v22 = vld [vmem:[%s0 + $0x38] sm:$0xff]
  %v23 = vlaneseq
  %v24 = vand.u32 %v23, 127
  %25 = vset.pattern.permute.xlu0 0
  %26 = vperm.xlu0 %25, %v15
  %v27 = vpop.permute.xlu0 %26
  %28 = vset.pattern.permute.xlu0 0
  %29 = vperm.xlu0 %28, %v16
  %v30 = vpop.permute.xlu0 %29
  %31 = vset.pattern.permute.xlu0 0
  %32 = vperm.xlu0 %31, %v17
  %v33 = vpop.permute.xlu0 %32
  %34 = vset.pattern.permute.xlu0 0
  %35 = vperm.xlu0 %34, %v18
  %v36 = vpop.permute.xlu0 %35
  %37 = vset.pattern.permute.xlu0 0
  %38 = vperm.xlu0 %37, %v19
  %v39 = vpop.permute.xlu0 %38
  %40 = vset.pattern.permute.xlu0 0
  %41 = vperm.xlu0 %40, %v20
  %v42 = vpop.permute.xlu0 %41
  %43 = vset.pattern.permute.xlu0 0
  %44 = vperm.xlu0 %43, %v21
  %v45 = vpop.permute.xlu0 %44
  %46 = vset.pattern.permute.xlu0 0
  %47 = vperm.xlu0 %46, %v22
  %v48 = vpop.permute.xlu0 %47
  %vm49 = vcmp.eq.s32.totalorder %v27, %v24
  %vm50 = vcmp.eq.s32.totalorder %v30, %v24
  %vm51 = vcmp.eq.s32.totalorder %v33, %v24
  %vm52 = vcmp.eq.s32.totalorder %v36, %v24
  %vm53 = vcmp.eq.s32.totalorder %v39, %v24
  %vm54 = vcmp.eq.s32.totalorder %v42, %v24
  %vm55 = vcmp.eq.s32.totalorder %v45, %v24
  %vm56 = vcmp.eq.s32.totalorder %v48, %v24
  %v57 = vsel %vm49, 1, 0
  %v58 = vsel %vm50, 1, 0
  %v59 = vsel %vm51, 1, 0
  %v60 = vsel %vm52, 1, 0
  %v61 = vsel %vm53, 1, 0
  %v62 = vsel %vm54, 1, 0
  %v63 = vsel %vm55, 1, 0
  %v64 = vsel %vm56, 1, 0
  %v65 = vcvt.s32.f32 %v57
  %v66 = vcvt.s32.f32 %v58
  %v67 = vcvt.s32.f32 %v59
  %v68 = vcvt.s32.f32 %v60
  %v69 = vcvt.s32.f32 %v61
  %v70 = vcvt.s32.f32 %v62
  %v71 = vcvt.s32.f32 %v63
  %v72 = vcvt.s32.f32 %v64
  %v73 = vpack.c.bf16 %v66, %v65
  %v74 = vpack.c.bf16 %v68, %v67
  %v75 = vpack.c.bf16 %v70, %v69
  %v76 = vpack.c.bf16 %v72, %v71
  %v77 = vld [vmem:[%s1] sm:$0xf]
  %vm78 = vcmask 523264
  %v80 = vsel %vm78, %v77, 0
  %82 = vmatprep.subr.bf16.mxu0 0
  %83 = vmatpush1.bf16.msra.mxu0 %v73
  %84 = vmatprep.subr.bf16.mxu0 0
  %85 = vmatpush1.bf16.msra.mxu0 %v74
  %86 = vmatprep.subr.bf16.mxu0 0
  %87 = vmatpush1.bf16.msra.mxu0 %v75
  %88 = vmatprep.subr.bf16.mxu0 0
  %89 = vmatpush1.bf16.msra.mxu0 %v76
  %90 = vmatprep.subr.bf16.mxu0 0
  %91 = vmatpush1.bf16.msra.mxu0 0
  %92 = vmatprep.subr.bf16.mxu0 0
  %93 = vmatpush1.bf16.msra.mxu0 0
  %94 = vmatprep.subr.bf16.mxu0 0
  %95 = vmatpush1.bf16.msra.mxu0 0
  %96 = vmatprep.subr.bf16.mxu0 0
  %97 = vmatpush1.bf16.msra.mxu0 0
  %98 = vmatprep.subr.bf16.mxu0 0
  %99 = vmatpush1.bf16.msra.mxu0 0
  %100 = vmatprep.subr.bf16.mxu0 0
  %101 = vmatpush1.bf16.msra.mxu0 0
  %102 = vmatprep.subr.bf16.mxu0 0
  %103 = vmatpush1.bf16.msra.mxu0 0
  %104 = vmatprep.subr.bf16.mxu0 0
  %105 = vmatpush1.bf16.msra.mxu0 0
  %106 = vmatprep.subr.bf16.mxu0 0
  %107 = vmatpush1.bf16.msra.mxu0 0
  %108 = vmatprep.subr.bf16.mxu0 0
  %109 = vmatpush1.bf16.msra.mxu0 0
  %110 = vmatprep.subr.bf16.mxu0 0
  %111 = vmatpush1.bf16.msra.mxu0 0
  %112 = vmatprep.subr.bf16.mxu0 0
  %113 = vmatpush1.bf16.msra.mxu0 0
  %114 = vmatprep.mubr.bf16.mxu0 0
  %115 = vmatmul.mubr.bf16.gmra.mrb[0].mxu0 %v80
  %v116 = vpop.f32.mrb[0].mxu0
  %v117 = vadd.f32 0.0, %v116
  %v118 = vpop.f32.mrb[0].mxu0
  %v119 = vpop.f32.mrb[0].mxu0
  %v120 = vpop.f32.mrb[0].mxu0
  %121 = vdwg.mxu0
  %v122 = vpack.c.bf16 %v117, %v117
  %v123 = vld [vmem:[%s2] sm:$0xf]
  %v124 = vld [vmem:[%s2 + $0x4] sm:$0xf]
  %v125 = vld [vmem:[%s2 + $0x8] sm:$0xf]
  %v126 = vld [vmem:[%s2 + $0xc] sm:$0xf]
  %v127 = vld [vmem:[%s2 + $0x10] sm:$0xf]
  %v128 = vld [vmem:[%s2 + $0x14] sm:$0xf]
  %v129 = vld [vmem:[%s2 + $0x18] sm:$0xf]
  %v130 = vld [vmem:[%s2 + $0x1c] sm:$0xf]
  %v131 = vld [vmem:[%s2 + $0x20] sm:$0xf]
  %v132 = vld [vmem:[%s2 + $0x24] sm:$0xf]
  %v133 = vld [vmem:[%s2 + $0x28] sm:$0xf]
  %v134 = vld [vmem:[%s2 + $0x2c] sm:$0xf]
  %v135 = vld [vmem:[%s2 + $0x30] sm:$0xf]
  %v136 = vld [vmem:[%s2 + $0x34] sm:$0xf]
  %v137 = vld [vmem:[%s2 + $0x38] sm:$0xf]
  %v138 = vld [vmem:[%s2 + $0x3c] sm:$0xf]
  %v155 = vunpack.c.l.b16 %v123
  %v156 = vunpack.c.l.b16 %v124
  %v157 = vunpack.c.l.b16 %v125
  %v158 = vunpack.c.l.b16 %v126
  %v159 = vunpack.c.l.b16 %v127
  %v160 = vunpack.c.l.b16 %v128
  %v161 = vunpack.c.l.b16 %v129
  %v162 = vunpack.c.l.b16 %v130
  %v163 = vunpack.c.l.b16 %v131
  %v164 = vunpack.c.l.b16 %v132
  %v165 = vunpack.c.l.b16 %v133
  %v166 = vunpack.c.l.b16 %v134
  %v167 = vunpack.c.l.b16 %v135
  %v168 = vunpack.c.l.b16 %v136
  %v169 = vunpack.c.l.b16 %v137
  %v170 = vunpack.c.l.b16 %v138
  %v171 = vpack.c.b16 %v156, %v155
  %v172 = vpack.c.b16 %v158, %v157
  %v173 = vpack.c.b16 %v160, %v159
  %v174 = vpack.c.b16 %v162, %v161
  %v175 = vpack.c.b16 %v164, %v163
  %v176 = vpack.c.b16 %v166, %v165
  %v177 = vpack.c.b16 %v168, %v167
  %v178 = vpack.c.b16 %v170, %v169
  %187 = vmatprep.subr.bf16.mxu0 0
  %188 = vmatpush1.bf16.msra.mxu0 %v171
  %189 = vmatprep.subr.bf16.mxu0 0
  %190 = vmatpush1.bf16.msra.mxu0 %v172
  %191 = vmatprep.subr.bf16.mxu0 0
  %192 = vmatpush1.bf16.msra.mxu0 %v173
  %193 = vmatprep.subr.bf16.mxu0 0
  %194 = vmatpush1.bf16.msra.mxu0 %v174
  %195 = vmatprep.subr.bf16.mxu0 0
  %196 = vmatpush1.bf16.msra.mxu0 %v175
  %197 = vmatprep.subr.bf16.mxu0 0
  %198 = vmatpush1.bf16.msra.mxu0 %v176
  %199 = vmatprep.subr.bf16.mxu0 0
  %200 = vmatpush1.bf16.msra.mxu0 %v177
  %201 = vmatprep.subr.bf16.mxu0 0
  %202 = vmatpush1.bf16.msra.mxu0 %v178
  %203 = vmatprep.subr.bf16.mxu0 0
  %204 = vmatpush1.bf16.msra.mxu0 0
  %205 = vmatprep.subr.bf16.mxu0 0
  %206 = vmatpush1.bf16.msra.mxu0 0
  %207 = vmatprep.subr.bf16.mxu0 0
  %208 = vmatpush1.bf16.msra.mxu0 0
  %209 = vmatprep.subr.bf16.mxu0 0
  %210 = vmatpush1.bf16.msra.mxu0 0
  %211 = vmatprep.subr.bf16.mxu0 0
  %212 = vmatpush1.bf16.msra.mxu0 0
  %213 = vmatprep.subr.bf16.mxu0 0
  %214 = vmatpush1.bf16.msra.mxu0 0
  %215 = vmatprep.subr.bf16.mxu0 0
  %216 = vmatpush1.bf16.msra.mxu0 0
  %217 = vmatprep.subr.bf16.mxu0 0
  %218 = vmatpush1.bf16.msra.mxu0 0
  %219 = vmatprep.mubr.bf16.mxu0 0
  %220 = vmatmul.mubr.bf16.gmra.mrb[0].mxu0 %v122
  %v221 = vpop.f32.mrb[0].mxu0
  %v222 = vadd.f32 0.0, %v221
  %v223 = vpop.f32.mrb[0].mxu0
  %v224 = vpop.f32.mrb[0].mxu0
  %v225 = vpop.f32.mrb[0].mxu0
  %226 = vdwg.mxu0
  %227 = vst [vmem:[%s3] sm:$0xff] %v222
  // Predicated region
  $region14: #{forward.1} parent=0 // pred_check
    _
  $region15: #{forward.1} parent=0 // pred_check_branch
    %229 = sbr.rel (0) target = $region17
  $region16: #{forward.1} parent=0 // pred_region
    _
  $region17: #{forward.1} parent=0 // pred_fallthru
    _
  // Predicated region
  $region18: #{forward.1} parent=0 // pred_check
    _
  $region19: #{forward.1} parent=0 // pred_check_branch
    %231 = sbr.rel (0) target = $region21
  $region20: #{forward.1} parent=0 // pred_region
    _
  $region21: #{forward.1} parent=0 // pred_fallthru
    _

</llo_original>
